<compile_context>
chip_gen: v5e
topology: v5e:2x2
jax: 0.10.0
libtpu: 0.0.40
codegen_flags: <defaults>
</compile_context>

<pallas_src>
import functools

import jax
import jax.numpy as jnp
import numpy as np
from jax.experimental import pallas as pl
from jax.experimental.pallas import tpu as pltpu


# ------------------------- fused Pallas kernel -------------------------

def _block_kernel(x_ref, w1s_ref, wdm_ref, wcat_ref, b1_ref, b2_ref, bp_ref,
                  o_ref, *, K, H, W, nb):
    """Whole Block for `nb` images, channel-major (C, H*W) throughout.

    x_ref    : (nb, Cin_p, HW)   input, channel-major, Cin zero-padded to 8k
    w1s_ref  : (Ce, Cin_p)       expand weight^T, BN1 scale folded in
    wdm_ref  : (K*K, Ce, HW)     per-tap depthwise weight * BN2 scale * edge mask
    wcat_ref : (Co, Ce + Cin_p)  [project^T * s3 | shortcut^T * ss]
    b1_ref   : (Ce, 1)           BN1 bias (column, broadcast over lanes)
    b2_ref   : (Ce, 1)           BN2 bias
    bp_ref   : (Co, 1)           BN3 bias + shortcut-BN bias
    o_ref    : (nb, Co, HW)      output, channel-major (lane-dense store)
    """
    HW = H * W
    pad = K // 2

    for b in range(nb):                                     # static, small
        x = x_ref[b]                                        # (Cin_p, HW)

        # ---- conv1: 1x1 expand (BN1 scale folded) + bias + ReLU ----
        h1 = jnp.dot(w1s_ref[...], x, preferred_element_type=jnp.float32)
        h1 = jnp.maximum(h1 + b1_ref[...], 0.0)             # (Ce, HW)

        # ---- conv2: depthwise KxK (stride 1, pad K//2) via lane rolls ----
        # wdm already carries the per-tap weight, BN2 scale and the zero-pad
        # edge mask, so each tap is one roll (XLU) + one FMA (VPU).
        acc = jnp.zeros_like(h1)
        for dh in range(K):
            for dw in range(K):
                t = dh * K + dw
                off = (dh - pad) * W + (dw - pad)
                tap = h1 if off == 0 else pltpu.roll(h1, (-off) % HW, axis=1)
                acc = acc + tap * wdm_ref[t]
        h2 = jnp.maximum(acc + b2_ref[...], 0.0)             # (Ce, HW)

        # ---- conv3 + shortcut fused into one matmul, + combined bias ----
        hcat = jnp.concatenate([h2, x], axis=0)              # (Ce+Cin_p, HW)
        o_ref[b] = (jnp.dot(wcat_ref[...], hcat,
                            preferred_element_type=jnp.float32)
                    + bp_ref[...])


# ------------------------- Block forward (wrapper) -------------------------

def block_forward(x_nchw, p, K, stride=1):
    # TODO(synk): stride > 1 (no-residual) path, SE module and TemporalShift
    # variants are not implemented here.
    assert stride == 1
    x = x_nchw.astype(jnp.float32)
    N, Cin, H, W = x.shape
    HW = H * W
    Ce = p["w1"].shape[1]
    Co = p["w3"].shape[1]
    pad = K // 2

    # channel-major input, Cin zero-padded up to a multiple of 8 sublanes so
    # the in-kernel concat([h2, x]) is vreg-aligned (padding is free: the
    # matching weight columns are zero).
    Cin_p = -(-Cin // 8) * 8
    x_cm = x.reshape(N, Cin, HW)                                  # free reshape
    if Cin_p != Cin:
        x_cm = jnp.concatenate(
            [x_cm, jnp.zeros((N, Cin_p - Cin, HW), jnp.float32)], axis=1)

    # fold BN scales into the (tiny) weights, once, in XLA.
    w1s = p["w1"].T * p["s1"][:, None]                            # (Ce, Cin)
    w3s = p["w3"].T * p["s3"][:, None]                            # (Co, Ce)
    wss = p["ws"].T * p["ss"][:, None]                            # (Co, Cin)
    if Cin_p != Cin:
        w1s = jnp.pad(w1s, ((0, 0), (0, Cin_p - Cin)))
        wss = jnp.pad(wss, ((0, 0), (0, Cin_p - Cin)))
    wcat = jnp.concatenate([w3s, wss], axis=1)                    # (Co, Ce+Cin_p)

    # depthwise: per-tap weight * BN2 scale * zero-pad edge mask, built once.
    ii = jnp.arange(HW)
    h_idx, w_idx = ii // W, ii % W
    masks = []
    for dh in range(K):
        for dw in range(K):
            oh, ow = dh - pad, dw - pad
            valid = ((h_idx + oh >= 0) & (h_idx + oh < H) &
                     (w_idx + ow >= 0) & (w_idx + ow < W))
            masks.append(valid.astype(jnp.float32))
    mask = jnp.stack(masks)                                       # (K*K, HW)
    wdm = (p["wd"] * p["s2"][None, :])[:, :, None] * mask[:, None, :]
    # wdm: (K*K, Ce, HW)

    b1c = p["b1"][:, None]                                        # (Ce, 1)
    b2c = p["b2"][:, None]                                        # (Ce, 1)
    bpc = (p["b3"] + p["bs"])[:, None]                            # (Co, 1)

    # images per grid step: more work per step for larger batches, but keep
    # at least 2 grid steps so v7x's two TensorCores both get work.
    nb = 2 if (N % 2 == 0 and N >= 4) else 1
    grid = (N // nb,)

    kern = functools.partial(_block_kernel, K=K, H=H, W=W, nb=nb)
    out = pl.pallas_call(
        kern,
        out_shape=jax.ShapeDtypeStruct((N, Co, HW), jnp.float32),
        grid_spec=pltpu.PrefetchScalarGridSpec(
            num_scalar_prefetch=0,
            grid=grid,
            in_specs=[
                pl.BlockSpec((nb, Cin_p, HW), lambda n: (n, 0, 0)),   # x
                pl.BlockSpec((Ce, Cin_p), lambda n: (0, 0)),          # w1s
                pl.BlockSpec((K * K, Ce, HW), lambda n: (0, 0, 0)),   # wdm
                pl.BlockSpec((Co, Ce + Cin_p), lambda n: (0, 0)),     # wcat
                pl.BlockSpec((Ce, 1), lambda n: (0, 0)),              # b1
                pl.BlockSpec((Ce, 1), lambda n: (0, 0)),              # b2
                pl.BlockSpec((Co, 1), lambda n: (0, 0)),              # bp
            ],
            out_specs=pl.BlockSpec((nb, Co, HW), lambda n: (n, 0, 0)),
        ),
        compiler_params=pltpu.CompilerParams(
            dimension_semantics=("parallel",)),
    )(x_cm, w1s, wdm, wcat, b1c, b2c, bpc)

    return out.reshape(N, Co, H, W)          # channel-major -> NCHW for free


# ------------------------- pure-JAX reference -------------------------

def reference(x_nchw, p, K):
    x = x_nchw.astype(jnp.float32)
    Ce = p["w1"].shape[1]
    dn = ("NCHW", "OIHW", "NCHW")
    hp = jax.lax.Precision.HIGHEST
    pad = K // 2

    w1 = jnp.transpose(p["w1"])[:, :, None, None]
    y = jax.lax.conv_general_dilated(x, w1, (1, 1), "VALID",
                                     dimension_numbers=dn, precision=hp)
    y = jnp.maximum(y * p["s1"][None, :, None, None]
                    + p["b1"][None, :, None, None], 0.0)

    wd = jnp.transpose(p["wd"]).reshape(Ce, 1, K, K)
    y = jax.lax.conv_general_dilated(y, wd, (1, 1), ((pad, pad), (pad, pad)),
                                     feature_group_count=Ce,
                                     dimension_numbers=dn, precision=hp)
    y = jnp.maximum(y * p["s2"][None, :, None, None]
                    + p["b2"][None, :, None, None], 0.0)

    w3 = jnp.transpose(p["w3"])[:, :, None, None]
    y = jax.lax.conv_general_dilated(y, w3, (1, 1), "VALID",
                                     dimension_numbers=dn, precision=hp)
    y = y * p["s3"][None, :, None, None] + p["b3"][None, :, None, None]

    ws = jnp.transpose(p["ws"])[:, :, None, None]
    sc = jax.lax.conv_general_dilated(x, ws, (1, 1), "VALID",
                                      dimension_numbers=dn, precision=hp)
    sc = sc * p["ss"][None, :, None, None] + p["bs"][None, :, None, None]
    return y + sc


# ------------------------- parameter init -------------------------

def fold_bn(key, C):
    kg, kb, km, kv = jax.random.split(key, 4)
    gamma = jax.random.uniform(kg, (C,), minval=0.5, maxval=1.5)
    beta = 0.1 * jax.random.normal(kb, (C,))
    mean = 0.1 * jax.random.normal(km, (C,))
    var = jax.random.uniform(kv, (C,), minval=0.5, maxval=1.5)
    eps = 1e-5
    scale = gamma / jnp.sqrt(var + eps)
    bias = beta - mean * scale
    return scale.astype(jnp.float32), bias.astype(jnp.float32)


if __name__ == "__main__":
    N, Cin, H, W = 2, 4, 16, 16
    Ce, Co, K, stride = 32, 8, 3, 1

    key = jax.random.PRNGKey(0)
    keys = jax.random.split(key, 9)
    x = jax.random.normal(keys[0], (N, Cin, H, W), dtype=jnp.float32)

    p = {
        "w1": 0.2 * jax.random.normal(keys[1], (Cin, Ce), dtype=jnp.float32),
        "wd": 0.2 * jax.random.normal(keys[2], (K * K, Ce), dtype=jnp.float32),
        "w3": 0.2 * jax.random.normal(keys[3], (Ce, Co), dtype=jnp.float32),
        "ws": 0.2 * jax.random.normal(keys[4], (Cin, Co), dtype=jnp.float32),
    }
    p["s1"], p["b1"] = fold_bn(keys[5], Ce)
    p["s2"], p["b2"] = fold_bn(keys[6], Ce)
    p["s3"], p["b3"] = fold_bn(keys[7], Co)
    p["ss"], p["bs"] = fold_bn(keys[8], Co)

    out = jax.block_until_ready(block_forward(x, p, K, stride))
    ref = jax.block_until_ready(reference(x, p, K))

    assert out.shape == (N, Co, H, W)
    # default (bf16-pass) MXU precision vs. a HIGHEST-precision reference:
    # tolerance loosened accordingly.
    np.testing.assert_allclose(np.asarray(out), np.asarray(ref),
                               rtol=2e-2, atol=2e-2)
    print("KERNEL_OK")
</pallas_src>

<mosaic_0001>
module attributes {stable_mosaic.version = 11 : i64} {
  func.func @_block_kernel(%arg0: i32, %arg1: memref<1x8x256xf32, #tpu.memory_space<vmem>>, %arg2: memref<32x8xf32, #tpu.memory_space<vmem>>, %arg3: memref<9x32x256xf32, #tpu.memory_space<vmem>>, %arg4: memref<8x40xf32, #tpu.memory_space<vmem>>, %arg5: memref<32x1xf32, #tpu.memory_space<vmem>>, %arg6: memref<32x1xf32, #tpu.memory_space<vmem>>, %arg7: memref<8x1xf32, #tpu.memory_space<vmem>>, %arg8: memref<1x8x256xf32, #tpu.memory_space<vmem>>) attributes {dimension_semantics = [#tpu.dimension_semantics<parallel>], iteration_bounds = array<i64: 2>, scalar_prefetch = 0 : i64, scratch_operands = 0 : i64, tpu.core_type = #tpu.core_type<tc>, window_params = [{transform_indices = @transform_0, window_bounds = array<i64: 1, 8, 256>}, {pipeline_mode = #tpu.pipeline_mode<synchronous>, transform_indices = @transform_1, window_bounds = array<i64: 32, 8>}, {pipeline_mode = #tpu.pipeline_mode<synchronous>, transform_indices = @transform_2, window_bounds = array<i64: 9, 32, 256>}, {pipeline_mode = #tpu.pipeline_mode<synchronous>, transform_indices = @transform_3, window_bounds = array<i64: 8, 40>}, {pipeline_mode = #tpu.pipeline_mode<synchronous>, transform_indices = @transform_4, window_bounds = array<i64: 32, 1>}, {pipeline_mode = #tpu.pipeline_mode<synchronous>, transform_indices = @transform_5, window_bounds = array<i64: 32, 1>}, {pipeline_mode = #tpu.pipeline_mode<synchronous>, transform_indices = @transform_6, window_bounds = array<i64: 8, 1>}, {transform_indices = @transform_7, window_bounds = array<i64: 1, 8, 256>}]} {
    %c0 = arith.constant 0 : index
    %c0_0 = arith.constant 0 : index
    %c0_1 = arith.constant 0 : index
    %0 = vector.load %arg1[%c0, %c0_0, %c0_1] : memref<1x8x256xf32, #tpu.memory_space<vmem>>, vector<1x8x256xf32>
    %1 = vector.shape_cast %0 : vector<1x8x256xf32> to vector<8x256xf32>
    %c0_2 = arith.constant 0 : index
    %c0_3 = arith.constant 0 : index
    %2 = vector.load %arg2[%c0_2, %c0_3] : memref<32x8xf32, #tpu.memory_space<vmem>>, vector<32x8xf32>
    %cst = arith.constant dense<0.000000e+00> : vector<32x256xf32>
    %3 = tpu.matmul %2, %1, %cst {dimension_numbers = #tpu.dot_dimension_numbers<[1], [0], [0], [1], [0, 0, 1, 1], [], []>} : vector<32x8xf32>, vector<8x256xf32>, vector<32x256xf32> -> vector<32x256xf32>
    %c0_4 = arith.constant 0 : index
    %c0_5 = arith.constant 0 : index
    %4 = vector.load %arg5[%c0_4, %c0_5] : memref<32x1xf32, #tpu.memory_space<vmem>>, vector<32x1xf32>
    %5 = vector.broadcast %4 : vector<32x1xf32> to vector<32x256xf32>
    %6 = arith.addf %3, %5 : vector<32x256xf32>
    %cst_6 = arith.constant 0.000000e+00 : f32
    %7 = vector.broadcast %cst_6 : f32 to vector<32x256xf32>
    %8 = arith.maximumf %6, %7 : vector<32x256xf32>
    %cst_7 = arith.constant 0.000000e+00 : f32
    %9 = vector.broadcast %cst_7 : f32 to vector<32x256xf32>
    %c17_i32 = arith.constant 17 : i32
    %10 = tpu.dynamic_rotate %8 by %c17_i32 dim 1 : vector<32x256xf32>, i32 -> vector<32x256xf32>
    %c0_8 = arith.constant 0 : index
    %c0_9 = arith.constant 0 : index
    %c0_10 = arith.constant 0 : index
    %11 = vector.load %arg3[%c0_8, %c0_9, %c0_10] : memref<9x32x256xf32, #tpu.memory_space<vmem>>, vector<1x32x256xf32>
    %12 = vector.shape_cast %11 : vector<1x32x256xf32> to vector<32x256xf32>
    %13 = arith.mulf %10, %12 : vector<32x256xf32>
    %14 = arith.addf %9, %13 : vector<32x256xf32>
    %c16_i32 = arith.constant 16 : i32
    %15 = tpu.dynamic_rotate %8 by %c16_i32 dim 1 : vector<32x256xf32>, i32 -> vector<32x256xf32>
    %c1 = arith.constant 1 : index
    %c0_11 = arith.constant 0 : index
    %c0_12 = arith.constant 0 : index
    %16 = vector.load %arg3[%c1, %c0_11, %c0_12] : memref<9x32x256xf32, #tpu.memory_space<vmem>>, vector<1x32x256xf32>
    %17 = vector.shape_cast %16 : vector<1x32x256xf32> to vector<32x256xf32>
    %18 = arith.mulf %15, %17 : vector<32x256xf32>
    %19 = arith.addf %14, %18 : vector<32x256xf32>
    %c15_i32 = arith.constant 15 : i32
    %20 = tpu.dynamic_rotate %8 by %c15_i32 dim 1 : vector<32x256xf32>, i32 -> vector<32x256xf32>
    %c2 = arith.constant 2 : index
    %c0_13 = arith.constant 0 : index
    %c0_14 = arith.constant 0 : index
    %21 = vector.load %arg3[%c2, %c0_13, %c0_14] : memref<9x32x256xf32, #tpu.memory_space<vmem>>, vector<1x32x256xf32>
    %22 = vector.shape_cast %21 : vector<1x32x256xf32> to vector<32x256xf32>
    %23 = arith.mulf %20, %22 : vector<32x256xf32>
    %24 = arith.addf %19, %23 : vector<32x256xf32>
    %c1_i32 = arith.constant 1 : i32
    %25 = tpu.dynamic_rotate %8 by %c1_i32 dim 1 : vector<32x256xf32>, i32 -> vector<32x256xf32>
    %c3 = arith.constant 3 : index
    %c0_15 = arith.constant 0 : index
    %c0_16 = arith.constant 0 : index
    %26 = vector.load %arg3[%c3, %c0_15, %c0_16] : memref<9x32x256xf32, #tpu.memory_space<vmem>>, vector<1x32x256xf32>
    %27 = vector.shape_cast %26 : vector<1x32x256xf32> to vector<32x256xf32>
    %28 = arith.mulf %25, %27 : vector<32x256xf32>
    %29 = arith.addf %24, %28 : vector<32x256xf32>
    %c4 = arith.constant 4 : index
    %c0_17 = arith.constant 0 : index
    %c0_18 = arith.constant 0 : index
    %30 = vector.load %arg3[%c4, %c0_17, %c0_18] : memref<9x32x256xf32, #tpu.memory_space<vmem>>, vector<1x32x256xf32>
    %31 = vector.shape_cast %30 : vector<1x32x256xf32> to vector<32x256xf32>
    %32 = arith.mulf %8, %31 : vector<32x256xf32>
    %33 = arith.addf %29, %32 : vector<32x256xf32>
    %c255_i32 = arith.constant 255 : i32
    %34 = tpu.dynamic_rotate %8 by %c255_i32 dim 1 : vector<32x256xf32>, i32 -> vector<32x256xf32>
    %c5 = arith.constant 5 : index
    %c0_19 = arith.constant 0 : index
    %c0_20 = arith.constant 0 : index
    %35 = vector.load %arg3[%c5, %c0_19, %c0_20] : memref<9x32x256xf32, #tpu.memory_space<vmem>>, vector<1x32x256xf32>
    %36 = vector.shape_cast %35 : vector<1x32x256xf32> to vector<32x256xf32>
    %37 = arith.mulf %34, %36 : vector<32x256xf32>
    %38 = arith.addf %33, %37 : vector<32x256xf32>
    %c241_i32 = arith.constant 241 : i32
    %39 = tpu.dynamic_rotate %8 by %c241_i32 dim 1 : vector<32x256xf32>, i32 -> vector<32x256xf32>
    %c6 = arith.constant 6 : index
    %c0_21 = arith.constant 0 : index
    %c0_22 = arith.constant 0 : index
    %40 = vector.load %arg3[%c6, %c0_21, %c0_22] : memref<9x32x256xf32, #tpu.memory_space<vmem>>, vector<1x32x256xf32>
    %41 = vector.shape_cast %40 : vector<1x32x256xf32> to vector<32x256xf32>
    %42 = arith.mulf %39, %41 : vector<32x256xf32>
    %43 = arith.addf %38, %42 : vector<32x256xf32>
    %c240_i32 = arith.constant 240 : i32
    %44 = tpu.dynamic_rotate %8 by %c240_i32 dim 1 : vector<32x256xf32>, i32 -> vector<32x256xf32>
    %c7 = arith.constant 7 : index
    %c0_23 = arith.constant 0 : index
    %c0_24 = arith.constant 0 : index
    %45 = vector.load %arg3[%c7, %c0_23, %c0_24] : memref<9x32x256xf32, #tpu.memory_space<vmem>>, vector<1x32x256xf32>
    %46 = vector.shape_cast %45 : vector<1x32x256xf32> to vector<32x256xf32>
    %47 = arith.mulf %44, %46 : vector<32x256xf32>
    %48 = arith.addf %43, %47 : vector<32x256xf32>
    %c239_i32 = arith.constant 239 : i32
    %49 = tpu.dynamic_rotate %8 by %c239_i32 dim 1 : vector<32x256xf32>, i32 -> vector<32x256xf32>
    %c8 = arith.constant 8 : index
    %c0_25 = arith.constant 0 : index
    %c0_26 = arith.constant 0 : index
    %50 = vector.load %arg3[%c8, %c0_25, %c0_26] : memref<9x32x256xf32, #tpu.memory_space<vmem>>, vector<1x32x256xf32>
    %51 = vector.shape_cast %50 : vector<1x32x256xf32> to vector<32x256xf32>
    %52 = arith.mulf %49, %51 : vector<32x256xf32>
    %53 = arith.addf %48, %52 : vector<32x256xf32>
    %c0_27 = arith.constant 0 : index
    %c0_28 = arith.constant 0 : index
    %54 = vector.load %arg6[%c0_27, %c0_28] : memref<32x1xf32, #tpu.memory_space<vmem>>, vector<32x1xf32>
    %55 = vector.broadcast %54 : vector<32x1xf32> to vector<32x256xf32>
    %56 = arith.addf %53, %55 : vector<32x256xf32>
    %cst_29 = arith.constant 0.000000e+00 : f32
    %57 = vector.broadcast %cst_29 : f32 to vector<32x256xf32>
    %58 = arith.maximumf %56, %57 : vector<32x256xf32>
    %59 = tpu.concatenate %58, %1 in 0 : vector<32x256xf32>, vector<8x256xf32> -> vector<40x256xf32>
    %c0_30 = arith.constant 0 : index
    %c0_31 = arith.constant 0 : index
    %60 = vector.load %arg4[%c0_30, %c0_31] : memref<8x40xf32, #tpu.memory_space<vmem>>, vector<8x40xf32>
    %cst_32 = arith.constant dense<0.000000e+00> : vector<8x256xf32>
    %61 = tpu.matmul %60, %59, %cst_32 {dimension_numbers = #tpu.dot_dimension_numbers<[1], [0], [0], [1], [0, 0, 1, 1], [], []>} : vector<8x40xf32>, vector<40x256xf32>, vector<8x256xf32> -> vector<8x256xf32>
    %c0_33 = arith.constant 0 : index
    %c0_34 = arith.constant 0 : index
    %62 = vector.load %arg7[%c0_33, %c0_34] : memref<8x1xf32, #tpu.memory_space<vmem>>, vector<8x1xf32>
    %63 = vector.broadcast %62 : vector<8x1xf32> to vector<8x256xf32>
    %64 = arith.addf %61, %63 : vector<8x256xf32>
    %c0_35 = arith.constant 0 : index
    %c0_36 = arith.constant 0 : index
    %c0_37 = arith.constant 0 : index
    %65 = vector.load %arg8[%c0_35, %c0_36, %c0_37] : memref<1x8x256xf32, #tpu.memory_space<vmem>>, vector<1x8x256xf32>
    %66 = vector.shape_cast %65 : vector<1x8x256xf32> to vector<8x256xf32>
    %67 = vector.shape_cast %64 : vector<8x256xf32> to vector<1x8x256xf32>
    tpu.vector_store %arg8[%c0_35, %c0_36, %c0_37], %67 {strides = array<i32>} : memref<1x8x256xf32, #tpu.memory_space<vmem>>, vector<1x8x256xf32>,
    return
  }
  func.func @transform_0(%arg0: i32) -> (i32, i32, i32) {
    %c0_i32 = arith.constant 0 : i32
    %c0_i32_0 = arith.constant 0 : i32
    %c0_i32_1 = arith.constant 0 : i32
    return %arg0, %c0_i32, %c0_i32_0 : i32, i32, i32
  }
  func.func @transform_1(%arg0: i32) -> (i32, i32) {
    %c0_i32 = arith.constant 0 : i32
    %c0_i32_0 = arith.constant 0 : i32
    %c0_i32_1 = arith.constant 0 : i32
    return %c0_i32, %c0_i32_0 : i32, i32
  }
  func.func @transform_2(%arg0: i32) -> (i32, i32, i32) {
    %c0_i32 = arith.constant 0 : i32
    %c0_i32_0 = arith.constant 0 : i32
    %c0_i32_1 = arith.constant 0 : i32
    %c0_i32_2 = arith.constant 0 : i32
    return %c0_i32, %c0_i32_0, %c0_i32_1 : i32, i32, i32
  }
  func.func @transform_3(%arg0: i32) -> (i32, i32) {
    %c0_i32 = arith.constant 0 : i32
    %c0_i32_0 = arith.constant 0 : i32
    %c0_i32_1 = arith.constant 0 : i32
    return %c0_i32, %c0_i32_0 : i32, i32
  }
  func.func @transform_4(%arg0: i32) -> (i32, i32) {
    %c0_i32 = arith.constant 0 : i32
    %c0_i32_0 = arith.constant 0 : i32
    %c0_i32_1 = arith.constant 0 : i32
    return %c0_i32, %c0_i32_0 : i32, i32
  }
  func.func @transform_5(%arg0: i32) -> (i32, i32) {
    %c0_i32 = arith.constant 0 : i32
    %c0_i32_0 = arith.constant 0 : i32
    %c0_i32_1 = arith.constant 0 : i32
    return %c0_i32, %c0_i32_0 : i32, i32
  }
  func.func @transform_6(%arg0: i32) -> (i32, i32) {
    %c0_i32 = arith.constant 0 : i32
    %c0_i32_0 = arith.constant 0 : i32
    %c0_i32_1 = arith.constant 0 : i32
    return %c0_i32, %c0_i32_0 : i32, i32
  }
  func.func @transform_7(%arg0: i32) -> (i32, i32, i32) {
    %c0_i32 = arith.constant 0 : i32
    %c0_i32_0 = arith.constant 0 : i32
    %c0_i32_1 = arith.constant 0 : i32
    return %arg0, %c0_i32, %c0_i32_0 : i32, i32, i32
  }
}

</mosaic_0001>

<llo_original>
// kernel: tpu_custom_call.1
$region0: #{tpu_custom_call.1}
  #allocation0 [shape = 'u32[]', space=smem, size = 0x4, offset = 0x4, fixed_abs, tag = 'smem constant byte address 0x4 - core index']
  #allocation1 [shape = 'u32[72,128]{1,0:T(1,128)}', space=vmem, size = 0x9000, scoped, tag = 'internal scratch']
  %s0 = inlined_call_operand.vmem [shape: f32[2,8,256], index: 0, kind: input, shape index: {}]
  %s1 = inlined_call_operand.vmem [shape: f32[32,8], index: 1, kind: input, shape index: {}]
  %s2 = inlined_call_operand.hbm [shape: f32[9,32,256], index: 2, kind: input, shape index: {}]
  %s3 = inlined_call_operand.vmem [shape: f32[8,40], index: 3, kind: input, shape index: {}]
  %s4 = inlined_call_operand.vmem [shape: f32[32,1], index: 4, kind: input, shape index: {}]
  %s5 = inlined_call_operand.vmem [shape: f32[32,1], index: 5, kind: input, shape index: {}]
  %s6 = inlined_call_operand.vmem [shape: f32[8,1], index: 6, kind: input, shape index: {}]
  %s7 = inlined_call_operand.hbm [shape: f32[2,8,256], index: 7, kind: output, shape index: {}]
  %s8 = sld [smem:[#allocation0]]
  $region65: #{tpu_custom_call.1} parent=0
    _
  %s10 = ssub.s32 1, %s8
  %s11 = scalar_select 0, %s10, %s8
  $region1: #{tpu_custom_call.1} parent=0
    #allocation2 [shape = 'u8[294912]{0}', space=vmem, size = 0x48000, scoped, tag = 'input window, operand 2, single buffered']
    #allocation3 [shape = 's32[2]{0}', space=sflag, size = 0x8, scoped, tag = 'scoped memory for tpu_custom_call.1']
    #allocation4 [shape = 's32[2]{0}', space=sflag, size = 0x8, scoped, tag = 'scoped memory for tpu_custom_call.1']
    #allocation5 [shape = 'u8[16384]{0}', space=vmem, size = 0x4000, scoped, tag = 'output window, operand 0']
    %12 = vsyncpa [#allocation3], 0
    %13 = vsyncpa [#allocation4], 0
    %s14 = scalar_lea.sflag [#allocation4], 1
    %15 = vsyncpa %s14, 0
    loop: start=0, step=1, limit=4
    $region2: #{tpu_custom_call.1} parent=1 // loop_pre_header
      _
    $region3: #{tpu_custom_call.1} parent=1 // loop_header
      %s17 = sphi 0, %s21
      %p18 = scmp.ge.s32.totalorder %s17, 4
      %s27 = sphi 0, %s29
      %s30 = sphi 0, %s27
      %s31 = sphi 0, %s30
      %s47 = sphi 0, %s31
      %s51 = sphi 0, %s51
      %s53 = sphi 0, %s51
      %s54 = sphi 0, %s53
      %s68 = sphi 0, %s54
      %s72 = sphi 0, %s72
      %s74 = sphi 0, %s72
      %s75 = sphi 0, %s74
      %s89 = sphi 0, %s75
      %s93 = sphi 0, %s93
      %s95 = sphi 0, %s93
      %s96 = sphi 0, %s95
      %s110 = sphi 0, %s96
      %s114 = sphi 0, %s114
      %s116 = sphi 0, %s114
      %s117 = sphi 0, %s116
      %s131 = sphi 0, %s117
      %s135 = sphi 0, %s135
      %s137 = sphi 0, %s135
      %s138 = sphi 0, %s137
      %s152 = sphi 0, %s138
      %s156 = sphi 0, %s156
      %s158 = sphi 0, %s156
      %s159 = sphi 0, %s158
      %s173 = sphi 0, %s159
      %s179 = sphi 0, %s181
      %s182 = sphi 0, %s179
      %s183 = sphi 0, %s182
      %s199 = sphi 0, %s183
    $region4: #{tpu_custom_call.1} parent=1 // loop_header_branch
      %20 = sbr.rel (%p18) target = $region8
    $region5: #{tpu_custom_call.1} parent=1 // loop_body
      %s22 = ssub.s32 %s17, 1
      %s23 = ssub.s32 %s17, 2
      %s24 = sadd.s32 %s17, 1
      %s25 = ssub.s32 %s17, %s24
      %p26 = scmp.eq.s32.totalorder %s25, 0
      %s28 = sadd.s32 %s27, 1
      %s29 = scalar_select %p26, %s27, %s28
      %p32 = pneg %p26
      %p33 = scmp.eq.s32.totalorder %s17, 1
      %p34 = por %p32, %p33
      %p35 = scmp.ne.s32.totalorder %s27, %s30
      %p36 = scmp.eq.s32.totalorder %s17, 0
      %p37 = por %p35, %p36
      %p38 = scmp.ne.s32.totalorder %s27, %s30
      %p39 = scmp.eq.s32.totalorder %s22, 1
      %p40 = por %p38, %p39
      %p41 = scmp.ne.s32.totalorder %s30, %s31
      %p42 = scmp.eq.s32.totalorder %s22, 0
      %p43 = por %p41, %p42
      %p44 = scmp.ne.s32.totalorder %s30, %s31
      %p45 = scmp.eq.s32.totalorder %s23, 1
      %p46 = por %p44, %p45
      %p48 = scmp.ne.s32.totalorder %s31, %s47
      %p49 = scmp.eq.s32.totalorder %s23, 0
      %p50 = por %p48, %p49
      %s52 = sadd.s32 %s51, 1
      %p55 = scmp.eq.s32.totalorder %s17, 1
      %p56 = scmp.ne.s32.totalorder %s51, %s53
      %p57 = scmp.eq.s32.totalorder %s17, 0
      %p58 = por %p56, %p57
      %p59 = scmp.ne.s32.totalorder %s51, %s53
      %p60 = scmp.eq.s32.totalorder %s22, 1
      %p61 = por %p59, %p60
      %p62 = scmp.ne.s32.totalorder %s53, %s54
      %p63 = scmp.eq.s32.totalorder %s22, 0
      %p64 = por %p62, %p63
      %p65 = scmp.ne.s32.totalorder %s53, %s54
      %p66 = scmp.eq.s32.totalorder %s23, 1
      %p67 = por %p65, %p66
      %p69 = scmp.ne.s32.totalorder %s54, %s68
      %p70 = scmp.eq.s32.totalorder %s23, 0
      %p71 = por %p69, %p70
      %s73 = sadd.s32 %s72, 1
      %p76 = scmp.eq.s32.totalorder %s17, 1
      %p77 = scmp.ne.s32.totalorder %s72, %s74
      %p78 = scmp.eq.s32.totalorder %s17, 0
      %p79 = por %p77, %p78
      %p80 = scmp.ne.s32.totalorder %s72, %s74
      %p81 = scmp.eq.s32.totalorder %s22, 1
      %p82 = por %p80, %p81
      %p83 = scmp.ne.s32.totalorder %s74, %s75
      %p84 = scmp.eq.s32.totalorder %s22, 0
      %p85 = por %p83, %p84
      %p86 = scmp.ne.s32.totalorder %s74, %s75
      %p87 = scmp.eq.s32.totalorder %s23, 1
      %p88 = por %p86, %p87
      %p90 = scmp.ne.s32.totalorder %s75, %s89
      %p91 = scmp.eq.s32.totalorder %s23, 0
      %p92 = por %p90, %p91
      %s94 = sadd.s32 %s93, 1
      %p97 = scmp.eq.s32.totalorder %s17, 1
      %p98 = scmp.ne.s32.totalorder %s93, %s95
      %p99 = scmp.eq.s32.totalorder %s17, 0
      %p100 = por %p98, %p99
      %p101 = scmp.ne.s32.totalorder %s93, %s95
      %p102 = scmp.eq.s32.totalorder %s22, 1
      %p103 = por %p101, %p102
      %p104 = scmp.ne.s32.totalorder %s95, %s96
      %p105 = scmp.eq.s32.totalorder %s22, 0
      %p106 = por %p104, %p105
      %p107 = scmp.ne.s32.totalorder %s95, %s96
      %p108 = scmp.eq.s32.totalorder %s23, 1
      %p109 = por %p107, %p108
      %p111 = scmp.ne.s32.totalorder %s96, %s110
      %p112 = scmp.eq.s32.totalorder %s23, 0
      %p113 = por %p111, %p112
      %s115 = sadd.s32 %s114, 1
      %p118 = scmp.eq.s32.totalorder %s17, 1
      %p119 = scmp.ne.s32.totalorder %s114, %s116
      %p120 = scmp.eq.s32.totalorder %s17, 0
      %p121 = por %p119, %p120
      %p122 = scmp.ne.s32.totalorder %s114, %s116
      %p123 = scmp.eq.s32.totalorder %s22, 1
      %p124 = por %p122, %p123
      %p125 = scmp.ne.s32.totalorder %s116, %s117
      %p126 = scmp.eq.s32.totalorder %s22, 0
      %p127 = por %p125, %p126
      %p128 = scmp.ne.s32.totalorder %s116, %s117
      %p129 = scmp.eq.s32.totalorder %s23, 1
      %p130 = por %p128, %p129
      %p132 = scmp.ne.s32.totalorder %s117, %s131
      %p133 = scmp.eq.s32.totalorder %s23, 0
      %p134 = por %p132, %p133
      %s136 = sadd.s32 %s135, 1
      %p139 = scmp.eq.s32.totalorder %s17, 1
      %p140 = scmp.ne.s32.totalorder %s135, %s137
      %p141 = scmp.eq.s32.totalorder %s17, 0
      %p142 = por %p140, %p141
      %p143 = scmp.ne.s32.totalorder %s135, %s137
      %p144 = scmp.eq.s32.totalorder %s22, 1
      %p145 = por %p143, %p144
      %p146 = scmp.ne.s32.totalorder %s137, %s138
      %p147 = scmp.eq.s32.totalorder %s22, 0
      %p148 = por %p146, %p147
      %p149 = scmp.ne.s32.totalorder %s137, %s138
      %p150 = scmp.eq.s32.totalorder %s23, 1
      %p151 = por %p149, %p150
      %p153 = scmp.ne.s32.totalorder %s138, %s152
      %p154 = scmp.eq.s32.totalorder %s23, 0
      %p155 = por %p153, %p154
      %s157 = sadd.s32 %s156, 1
      %p160 = scmp.eq.s32.totalorder %s17, 1
      %p161 = scmp.ne.s32.totalorder %s156, %s158
      %p162 = scmp.eq.s32.totalorder %s17, 0
      %p163 = por %p161, %p162
      %p164 = scmp.ne.s32.totalorder %s156, %s158
      %p165 = scmp.eq.s32.totalorder %s22, 1
      %p166 = por %p164, %p165
      %p167 = scmp.ne.s32.totalorder %s158, %s159
      %p168 = scmp.eq.s32.totalorder %s22, 0
      %p169 = por %p167, %p168
      %p170 = scmp.ne.s32.totalorder %s158, %s159
      %p171 = scmp.eq.s32.totalorder %s23, 1
      %p172 = por %p170, %p171
      %p174 = scmp.ne.s32.totalorder %s159, %s173
      %p175 = scmp.eq.s32.totalorder %s23, 0
      %p176 = por %p174, %p175
      %s177 = ssub.s32 %s17, %s24
      %p178 = scmp.eq.s32.totalorder %s177, 0
      %s180 = sadd.s32 %s179, 1
      %s181 = scalar_select %p178, %s179, %s180
      %p184 = pneg %p178
      %p185 = scmp.eq.s32.totalorder %s17, 1
      %p186 = por %p184, %p185
      %p187 = scmp.ne.s32.totalorder %s179, %s182
      %p188 = scmp.eq.s32.totalorder %s17, 0
      %p189 = por %p187, %p188
      %p190 = scmp.ne.s32.totalorder %s179, %s182
      %p191 = scmp.eq.s32.totalorder %s22, 1
      %p192 = por %p190, %p191
      %p193 = scmp.ne.s32.totalorder %s182, %s183
      %p194 = scmp.eq.s32.totalorder %s22, 0
      %p195 = por %p193, %p194
      %p196 = scmp.ne.s32.totalorder %s182, %s183
      %p197 = scmp.eq.s32.totalorder %s23, 1
      %p198 = por %p196, %p197
      %p200 = scmp.ne.s32.totalorder %s183, %s199
      %p201 = scmp.eq.s32.totalorder %s23, 0
      %p202 = por %p200, %p201
      %p203 = scmp.le.s32.totalorder 1, %s17
      %p204 = scmp.lt.s32.totalorder %s17, 3
      %p205 = pnand %p203, %p204
      %p206 = pneg %p205
      // Predicated region
      $region9: #{tpu_custom_call.1} parent=5 // pred_check
        _
      $region10: #{tpu_custom_call.1} parent=5 // pred_check_branch
        %208 = sbr.rel (%p205) target = $region12
      $region11: #{tpu_custom_call.1} parent=5 // pred_region
        %s209 = ssub.s32 %s17, 1
        // Predicated region
        $region13: #{tpu_custom_call.1} parent=11 // pred_check
          %p210 = pneg %p64
        $region14: #{tpu_custom_call.1} parent=11 // pred_check_branch
          %212 = sbr.rel (%p210) target = $region16
        $region15: #{tpu_custom_call.1} parent=11 // pred_region
          _
        $region16: #{tpu_custom_call.1} parent=11 // pred_fallthru
          _
        // Predicated region
        $region17: #{tpu_custom_call.1} parent=11 // pred_check
          %p213 = pneg %p85
        $region18: #{tpu_custom_call.1} parent=11 // pred_check_branch
          %215 = sbr.rel (%p213) target = $region20
        $region19: #{tpu_custom_call.1} parent=11 // pred_region
          %217 = vsyncadd [#allocation3], 0
          %s218 = sshll.u32 %s2, 4
          %s219 = int_to_ptr.hbm [resolvable:$true] %s218
          %s220 = sshll.u32 [#allocation2], 4
          %s221 = int_to_ptr.vmem [resolvable:$true] %s220
          %226 = dma.hbm_to_vmem [thread:$0]  %s219, 9216, %s221, [#allocation3], 256, 256, 16
        $region20: #{tpu_custom_call.1} parent=11 // pred_fallthru
          _
        // Predicated region
        $region21: #{tpu_custom_call.1} parent=11 // pred_check
          %p227 = pneg %p106
        $region22: #{tpu_custom_call.1} parent=11 // pred_check_branch
          %229 = sbr.rel (%p227) target = $region24
        $region23: #{tpu_custom_call.1} parent=11 // pred_region
          _
        $region24: #{tpu_custom_call.1} parent=11 // pred_fallthru
          _
        // Predicated region
        $region25: #{tpu_custom_call.1} parent=11 // pred_check
          %p230 = pneg %p127
        $region26: #{tpu_custom_call.1} parent=11 // pred_check_branch
          %232 = sbr.rel (%p230) target = $region28
        $region27: #{tpu_custom_call.1} parent=11 // pred_region
          _
        $region28: #{tpu_custom_call.1} parent=11 // pred_fallthru
          _
        // Predicated region
        $region29: #{tpu_custom_call.1} parent=11 // pred_check
          %p233 = pneg %p148
        $region30: #{tpu_custom_call.1} parent=11 // pred_check_branch
          %235 = sbr.rel (%p233) target = $region32
        $region31: #{tpu_custom_call.1} parent=11 // pred_region
          _
        $region32: #{tpu_custom_call.1} parent=11 // pred_fallthru
          _
        // Predicated region
        $region33: #{tpu_custom_call.1} parent=11 // pred_check
          %p236 = pneg %p169
        $region34: #{tpu_custom_call.1} parent=11 // pred_check_branch
          %238 = sbr.rel (%p236) target = $region36
        $region35: #{tpu_custom_call.1} parent=11 // pred_region
          _
        $region36: #{tpu_custom_call.1} parent=11 // pred_fallthru
          _
      $region12: #{tpu_custom_call.1} parent=5 // pred_fallthru
        _
      %p239 = scmp.lt.s32.totalorder %s17, 2
      // Predicated region
      $region37: #{tpu_custom_call.1} parent=5 // pred_check
        %p240 = pneg %p239
      $region38: #{tpu_custom_call.1} parent=5 // pred_check_branch
        %242 = sbr.rel (%p240) target = $region40
      $region39: #{tpu_custom_call.1} parent=5 // pred_region
        // Predicated region
        $region41: #{tpu_custom_call.1} parent=39 // pred_check
          %p243 = pneg %p37
        $region42: #{tpu_custom_call.1} parent=39 // pred_check_branch
          %245 = sbr.rel (%p243) target = $region44
        $region43: #{tpu_custom_call.1} parent=39 // pred_region
          %p246 = scmp.lt.s32.totalorder %s17, 1
          %s247 = scalar_select %p246, %s17, 1
          %s248 = smul.addr %s247, 2
          %s249 = smul.addr %s248, 8
          %s250 = scalar_lea.vmem %s0, %s249
        $region44: #{tpu_custom_call.1} parent=39 // pred_fallthru
          _
      $region40: #{tpu_custom_call.1} parent=5 // pred_fallthru
        _
      %p251 = scmp.le.s32.totalorder 1, %s17
      %p252 = scmp.lt.s32.totalorder %s17, 3
      %p253 = pnand %p251, %p252
      %p254 = pneg %p253
      // Predicated region
      $region45: #{tpu_custom_call.1} parent=5 // pred_check
        _
      $region46: #{tpu_custom_call.1} parent=5 // pred_check_branch
        %256 = sbr.rel (%p253) target = $region48
      $region47: #{tpu_custom_call.1} parent=5 // pred_region
        %s257 = ssub.s32 %s17, 1
        // Predicated region
        $region49: #{tpu_custom_call.1} parent=47 // pred_check
          %p258 = pneg %p85
        $region50: #{tpu_custom_call.1} parent=47 // pred_check_branch
          %260 = sbr.rel (%p258) target = $region52
        $region51: #{tpu_custom_call.1} parent=47 // pred_region
          %262 = dma.done [#allocation3], 9216
        $region52: #{tpu_custom_call.1} parent=47 // pred_fallthru
          _
        %p263 = scmp.lt.s32.totalorder %s22, 1
        %s264 = scalar_select %p263, %s22, 1
        %s265 = smul.addr %s264, 2
        %s266 = smul.addr %s265, 8
        %s267 = scalar_lea.vmem %s0, %s266
        %p268 = pneg %p43
        %p269 = pneg %p40
        %p270 = pneg %p64
        %p271 = pneg %p61
        %p272 = pneg %p85
        %p273 = pneg %p82
        %p274 = pneg %p106
        %p275 = pneg %p103
        %p276 = pneg %p127
        %p277 = pneg %p124
        %p278 = pneg %p148
        %p279 = pneg %p145
        %p280 = pneg %p169
        %p281 = pneg %p166
        %p282 = pneg %p195
        %p283 = pneg %p192
        %s284 = sand.u32 %s182, 1
        %s285 = scalar_lea.sflag [#allocation4], %s284
        %s286 = sand.u32 %s182, 1
        %s287 = smul.addr %s286, 16
        %s288 = scalar_lea.vmem [#allocation5], %s287
        %p289 = scmp.lt.s32.totalorder %s22, 1
        %s290 = scalar_select %p289, %s22, 1
        %s291 = smul.addr %s290, 2
        %s292 = smul.addr %s291, 8
        %s293 = scalar_lea.vmem %s0, %s292
        %v294 = vld [vmem:[%s293] sm:$0xff]
        %v295 = vld [vmem:[%s293 + $0x8] sm:$0xff]
        %v296 = vld [vmem:[%s1] sm:$0xff]
        %v297 = vld [vmem:[%s1 + $0x8] sm:$0xff]
        %v298 = vld [vmem:[%s1 + $0x10] sm:$0xff]
        %v299 = vld [vmem:[%s1 + $0x18] sm:$0xff]
        %v300 = vld [vmem:[%s4] sm:$0xff]
        %v301 = vld [vmem:[%s4 + $0x8] sm:$0xff]
        %v302 = vld [vmem:[%s4 + $0x10] sm:$0xff]
        %v303 = vld [vmem:[%s4 + $0x18] sm:$0xff]
        %305 = vset.pattern.permute.xlu0 0
        %306 = vperm.xlu0 %305, %v300
        %v307 = vpop.permute.xlu0 %306
        %310 = vset.pattern.permute.xlu0 0
        %311 = vperm.xlu0 %310, %v301
        %v312 = vpop.permute.xlu0 %311
        %315 = vset.pattern.permute.xlu0 0
        %316 = vperm.xlu0 %315, %v302
        %v317 = vpop.permute.xlu0 %316
        %320 = vset.pattern.permute.xlu0 0
        %321 = vperm.xlu0 %320, %v303
        %v322 = vpop.permute.xlu0 %321
        %vm324 = vcmask 64512
        %v326 = vsel %vm324, %v296, 0
        %v329 = vsel %vm324, %v297, 0
        %v332 = vsel %vm324, %v298, 0
        %v335 = vsel %vm324, %v299, 0
        %337 = vmatpush.msra.mxu0 0.0
        %338 = vmatpush.msra.mxu0 0.0
        %339 = vmatpush.msra.mxu0 0.0
        %340 = vmatpush.msra.mxu0 0.0
        %341 = vmatpush.msra.mxu0 0.0
        %342 = vmatpush.msra.mxu0 0.0
        %343 = vmatpush.msra.mxu0 0.0
        %344 = vmatpush.msra.mxu0 0.0
        %345 = vmatpush.msra.mxu0 0.0
        %346 = vmatpush.msra.mxu0 0.0
        %347 = vmatpush.msra.mxu0 0.0
        %348 = vmatpush.msra.mxu0 0.0
        %349 = vmatpush.msra.mxu0 0.0
        %350 = vmatpush.msra.mxu0 0.0
        %351 = vmatpush.msra.mxu0 0.0
        %352 = vmatpush.msra.mxu0 %v294
        %353 = vmatmul.f32.gmra.mxu0 %v326
        %v354 = vpop.f32.mrf.mxu0
        %v355 = vadd.f32 %v307, %v354
        %356 = vmatmul.f32.gmra.mxu0 %v329
        %v357 = vpop.f32.mrf.mxu0
        %v358 = vadd.f32 %v312, %v357
        %359 = vmatmul.f32.gmra.mxu0 %v332
        %v360 = vpop.f32.mrf.mxu0
        %v361 = vadd.f32 %v317, %v360
        %362 = vmatmul.f32.gmra.mxu0 %v335
        %v363 = vpop.f32.mrf.mxu0
        %v364 = vadd.f32 %v322, %v363
        %365 = vdwg.mxu0
        %366 = vmatpush.msra.mxu0 0.0
        %367 = vmatpush.msra.mxu0 0.0
        %368 = vmatpush.msra.mxu0 0.0
        %369 = vmatpush.msra.mxu0 0.0
        %370 = vmatpush.msra.mxu0 0.0
        %371 = vmatpush.msra.mxu0 0.0
        %372 = vmatpush.msra.mxu0 0.0
        %373 = vmatpush.msra.mxu0 0.0
        %374 = vmatpush.msra.mxu0 0.0
        %375 = vmatpush.msra.mxu0 0.0
        %376 = vmatpush.msra.mxu0 0.0
        %377 = vmatpush.msra.mxu0 0.0
        %378 = vmatpush.msra.mxu0 0.0
        %379 = vmatpush.msra.mxu0 0.0
        %380 = vmatpush.msra.mxu0 0.0
        %381 = vmatpush.msra.mxu0 %v295
        %382 = vmatmul.f32.gmra.mxu0 %v326
        %v383 = vpop.f32.mrf.mxu0
        %v384 = vadd.f32 %v307, %v383
        %385 = vmatmul.f32.gmra.mxu0 %v329
        %v386 = vpop.f32.mrf.mxu0
        %v387 = vadd.f32 %v312, %v386
        %388 = vmatmul.f32.gmra.mxu0 %v332
        %v389 = vpop.f32.mrf.mxu0
        %v390 = vadd.f32 %v317, %v389
        %391 = vmatmul.f32.gmra.mxu0 %v335
        %v392 = vpop.f32.mrf.mxu0
        %v393 = vadd.f32 %v322, %v392
        %394 = vdwg.mxu0
        %v395 = vmax.f32 %v355, 0.0
        %v396 = vmax.f32 %v384, 0.0
        %v397 = vmax.f32 %v358, 0.0
        %v398 = vmax.f32 %v387, 0.0
        %v399 = vmax.f32 %v361, 0.0
        %v400 = vmax.f32 %v390, 0.0
        %v401 = vmax.f32 %v364, 0.0
        %v402 = vmax.f32 %v393, 0.0
        %403 = vrot.lane.b32.xlu0 %v395, 17
        %v404 = vpop.permute.xlu0 %403
        %405 = vrot.lane.b32.xlu0 %v397, 17
        %v406 = vpop.permute.xlu0 %405
        %407 = vrot.lane.b32.xlu0 %v399, 17
        %v408 = vpop.permute.xlu0 %407
        %409 = vrot.lane.b32.xlu0 %v401, 17
        %v410 = vpop.permute.xlu0 %409
        %411 = vrot.lane.b32.xlu0 %v396, 17
        %v412 = vpop.permute.xlu0 %411
        %413 = vrot.lane.b32.xlu0 %v398, 17
        %v414 = vpop.permute.xlu0 %413
        %415 = vrot.lane.b32.xlu0 %v400, 17
        %v416 = vpop.permute.xlu0 %415
        %417 = vrot.lane.b32.xlu0 %v402, 17
        %v418 = vpop.permute.xlu0 %417
        %v419 = vlaneseq
        %v420 = vand.u32 %v419, 127
        %vm421 = vcmp.lt.s32.totalorder %v420, 17
        %v422 = vsel %vm421, %v404, %v412
        %v423 = vsel %vm421, %v406, %v414
        %v424 = vsel %vm421, %v408, %v416
        %v425 = vsel %vm421, %v410, %v418
        %v426 = vsel %vm421, %v412, %v404
        %v427 = vsel %vm421, %v414, %v406
        %v428 = vsel %vm421, %v416, %v408
        %v429 = vsel %vm421, %v418, %v410
        %v430 = vld [vmem:[#allocation2] sm:$0xff]
        %v431 = vld [vmem:[#allocation2 + $0x8] sm:$0xff]
        %v432 = vld [vmem:[#allocation2 + $0x10] sm:$0xff]
        %v433 = vld [vmem:[#allocation2 + $0x18] sm:$0xff]
        %v434 = vld [vmem:[#allocation2 + $0x20] sm:$0xff]
        %v435 = vld [vmem:[#allocation2 + $0x28] sm:$0xff]
        %v436 = vld [vmem:[#allocation2 + $0x30] sm:$0xff]
        %v437 = vld [vmem:[#allocation2 + $0x38] sm:$0xff]
        %v438 = vmul.f32 %v426, %v430
        %v439 = vmul.f32 %v422, %v431
        %v440 = vmul.f32 %v427, %v432
        %v441 = vmul.f32 %v423, %v433
        %v442 = vmul.f32 %v428, %v434
        %v443 = vmul.f32 %v424, %v435
        %v444 = vmul.f32 %v429, %v436
        %v445 = vmul.f32 %v425, %v437
        %v446 = vadd.f32 %v438, 0.0
        %v447 = vadd.f32 %v439, 0.0
        %v448 = vadd.f32 %v440, 0.0
        %v449 = vadd.f32 %v441, 0.0
        %v450 = vadd.f32 %v442, 0.0
        %v451 = vadd.f32 %v443, 0.0
        %v452 = vadd.f32 %v444, 0.0
        %v453 = vadd.f32 %v445, 0.0
        %454 = vrot.lane.b32.xlu0 %v395, 16
        %v455 = vpop.permute.xlu0 %454
        %456 = vrot.lane.b32.xlu0 %v397, 16
        %v457 = vpop.permute.xlu0 %456
        %458 = vrot.lane.b32.xlu0 %v399, 16
        %v459 = vpop.permute.xlu0 %458
        %460 = vrot.lane.b32.xlu0 %v401, 16
        %v461 = vpop.permute.xlu0 %460
        %462 = vrot.lane.b32.xlu0 %v396, 16
        %v463 = vpop.permute.xlu0 %462
        %464 = vrot.lane.b32.xlu0 %v398, 16
        %v465 = vpop.permute.xlu0 %464
        %466 = vrot.lane.b32.xlu0 %v400, 16
        %v467 = vpop.permute.xlu0 %466
        %468 = vrot.lane.b32.xlu0 %v402, 16
        %v469 = vpop.permute.xlu0 %468
        %vm470 = vcmp.lt.s32.totalorder %v420, 16
        %v471 = vsel %vm470, %v455, %v463
        %v472 = vsel %vm470, %v457, %v465
        %v473 = vsel %vm470, %v459, %v467
        %v474 = vsel %vm470, %v461, %v469
        %v475 = vsel %vm470, %v463, %v455
        %v476 = vsel %vm470, %v465, %v457
        %v477 = vsel %vm470, %v467, %v459
        %v478 = vsel %vm470, %v469, %v461
        %s479 = scalar_lea.vmem [#allocation2], 64
        %v480 = vld [vmem:[%s479] sm:$0xff]
        %v481 = vld [vmem:[%s479 + $0x8] sm:$0xff]
        %v482 = vld [vmem:[%s479 + $0x10] sm:$0xff]
        %v483 = vld [vmem:[%s479 + $0x18] sm:$0xff]
        %v484 = vld [vmem:[%s479 + $0x20] sm:$0xff]
        %v485 = vld [vmem:[%s479 + $0x28] sm:$0xff]
        %v486 = vld [vmem:[%s479 + $0x30] sm:$0xff]
        %v487 = vld [vmem:[%s479 + $0x38] sm:$0xff]
        %v488 = vmul.f32 %v475, %v480
        %v489 = vmul.f32 %v471, %v481
        %v490 = vmul.f32 %v476, %v482
        %v491 = vmul.f32 %v472, %v483
        %v492 = vmul.f32 %v477, %v484
        %v493 = vmul.f32 %v473, %v485
        %v494 = vmul.f32 %v478, %v486
        %v495 = vmul.f32 %v474, %v487
        %v496 = vadd.f32 %v446, %v488
        %v497 = vadd.f32 %v447, %v489
        %v498 = vadd.f32 %v448, %v490
        %v499 = vadd.f32 %v449, %v491
        %v500 = vadd.f32 %v450, %v492
        %v501 = vadd.f32 %v451, %v493
        %v502 = vadd.f32 %v452, %v494
        %v503 = vadd.f32 %v453, %v495
        %504 = vrot.lane.b32.xlu0 %v395, 15
        %v505 = vpop.permute.xlu0 %504
        %506 = vrot.lane.b32.xlu0 %v397, 15
        %v507 = vpop.permute.xlu0 %506
        %508 = vrot.lane.b32.xlu0 %v399, 15
        %v509 = vpop.permute.xlu0 %508
        %510 = vrot.lane.b32.xlu0 %v401, 15
        %v511 = vpop.permute.xlu0 %510
        %512 = vrot.lane.b32.xlu0 %v396, 15
        %v513 = vpop.permute.xlu0 %512
        %514 = vrot.lane.b32.xlu0 %v398, 15
        %v515 = vpop.permute.xlu0 %514
        %516 = vrot.lane.b32.xlu0 %v400, 15
        %v517 = vpop.permute.xlu0 %516
        %518 = vrot.lane.b32.xlu0 %v402, 15
        %v519 = vpop.permute.xlu0 %518
        %vm520 = vcmp.lt.s32.totalorder %v420, 15
        %v521 = vsel %vm520, %v505, %v513
        %v522 = vsel %vm520, %v507, %v515
        %v523 = vsel %vm520, %v509, %v517
        %v524 = vsel %vm520, %v511, %v519
        %v525 = vsel %vm520, %v513, %v505
        %v526 = vsel %vm520, %v515, %v507
        %v527 = vsel %vm520, %v517, %v509
        %v528 = vsel %vm520, %v519, %v511
        %s529 = scalar_lea.vmem [#allocation2], 128
        %v530 = vld [vmem:[%s529] sm:$0xff]
        %v531 = vld [vmem:[%s529 + $0x8] sm:$0xff]
        %v532 = vld [vmem:[%s529 + $0x10] sm:$0xff]
        %v533 = vld [vmem:[%s529 + $0x18] sm:$0xff]
        %v534 = vld [vmem:[%s529 + $0x20] sm:$0xff]
        %v535 = vld [vmem:[%s529 + $0x28] sm:$0xff]
        %v536 = vld [vmem:[%s529 + $0x30] sm:$0xff]
        %v537 = vld [vmem:[%s529 + $0x38] sm:$0xff]
        %v538 = vmul.f32 %v525, %v530
        %v539 = vmul.f32 %v521, %v531
        %v540 = vmul.f32 %v526, %v532
        %v541 = vmul.f32 %v522, %v533
        %v542 = vmul.f32 %v527, %v534
        %v543 = vmul.f32 %v523, %v535
        %v544 = vmul.f32 %v528, %v536
        %v545 = vmul.f32 %v524, %v537
        %v546 = vadd.f32 %v496, %v538
        %v547 = vadd.f32 %v497, %v539
        %v548 = vadd.f32 %v498, %v540
        %v549 = vadd.f32 %v499, %v541
        %v550 = vadd.f32 %v500, %v542
        %v551 = vadd.f32 %v501, %v543
        %v552 = vadd.f32 %v502, %v544
        %v553 = vadd.f32 %v503, %v545
        %554 = vrot.lane.b32.xlu0 %v395, 1
        %v555 = vpop.permute.xlu0 %554
        %556 = vrot.lane.b32.xlu0 %v397, 1
        %v557 = vpop.permute.xlu0 %556
        %558 = vrot.lane.b32.xlu0 %v399, 1
        %v559 = vpop.permute.xlu0 %558
        %560 = vrot.lane.b32.xlu0 %v401, 1
        %v561 = vpop.permute.xlu0 %560
        %562 = vrot.lane.b32.xlu0 %v396, 1
        %v563 = vpop.permute.xlu0 %562
        %564 = vrot.lane.b32.xlu0 %v398, 1
        %v565 = vpop.permute.xlu0 %564
        %566 = vrot.lane.b32.xlu0 %v400, 1
        %v567 = vpop.permute.xlu0 %566
        %568 = vrot.lane.b32.xlu0 %v402, 1
        %v569 = vpop.permute.xlu0 %568
        %vm570 = vcmp.lt.s32.totalorder %v420, 1
        %v571 = vsel %vm570, %v555, %v563
        %v572 = vsel %vm570, %v557, %v565
        %v573 = vsel %vm570, %v559, %v567
        %v574 = vsel %vm570, %v561, %v569
        %v575 = vsel %vm570, %v563, %v555
        %v576 = vsel %vm570, %v565, %v557
        %v577 = vsel %vm570, %v567, %v559
        %v578 = vsel %vm570, %v569, %v561
        %s579 = scalar_lea.vmem [#allocation2], 192
        %v580 = vld [vmem:[%s579] sm:$0xff]
        %v581 = vld [vmem:[%s579 + $0x8] sm:$0xff]
        %v582 = vld [vmem:[%s579 + $0x10] sm:$0xff]
        %v583 = vld [vmem:[%s579 + $0x18] sm:$0xff]
        %v584 = vld [vmem:[%s579 + $0x20] sm:$0xff]
        %v585 = vld [vmem:[%s579 + $0x28] sm:$0xff]
        %v586 = vld [vmem:[%s579 + $0x30] sm:$0xff]
        %v587 = vld [vmem:[%s579 + $0x38] sm:$0xff]
        %v588 = vmul.f32 %v575, %v580
        %v589 = vmul.f32 %v571, %v581
        %v590 = vmul.f32 %v576, %v582
        %v591 = vmul.f32 %v572, %v583
        %v592 = vmul.f32 %v577, %v584
        %v593 = vmul.f32 %v573, %v585
        %v594 = vmul.f32 %v578, %v586
        %v595 = vmul.f32 %v574, %v587
        %v596 = vadd.f32 %v546, %v588
        %v597 = vadd.f32 %v547, %v589
        %v598 = vadd.f32 %v548, %v590
        %v599 = vadd.f32 %v549, %v591
        %v600 = vadd.f32 %v550, %v592
        %v601 = vadd.f32 %v551, %v593
        %v602 = vadd.f32 %v552, %v594
        %v603 = vadd.f32 %v553, %v595
        %s604 = scalar_lea.vmem [#allocation2], 256
        %v605 = vld [vmem:[%s604] sm:$0xff]
        %v606 = vld [vmem:[%s604 + $0x8] sm:$0xff]
        %v607 = vld [vmem:[%s604 + $0x10] sm:$0xff]
        %v608 = vld [vmem:[%s604 + $0x18] sm:$0xff]
        %v609 = vld [vmem:[%s604 + $0x20] sm:$0xff]
        %v610 = vld [vmem:[%s604 + $0x28] sm:$0xff]
        %v611 = vld [vmem:[%s604 + $0x30] sm:$0xff]
        %v612 = vld [vmem:[%s604 + $0x38] sm:$0xff]
        %v613 = vmul.f32 %v395, %v605
        %v614 = vmul.f32 %v396, %v606
        %v615 = vmul.f32 %v397, %v607
        %v616 = vmul.f32 %v398, %v608
        %v617 = vmul.f32 %v399, %v609
        %v618 = vmul.f32 %v400, %v610
        %v619 = vmul.f32 %v401, %v611
        %v620 = vmul.f32 %v402, %v612
        %v621 = vadd.f32 %v596, %v613
        %v622 = vadd.f32 %v597, %v614
        %v623 = vadd.f32 %v598, %v615
        %v624 = vadd.f32 %v599, %v616
        %v625 = vadd.f32 %v600, %v617
        %v626 = vadd.f32 %v601, %v618
        %v627 = vadd.f32 %v602, %v619
        %v628 = vadd.f32 %v603, %v620
        %629 = vrot.lane.b32.xlu0 %v395, 127
        %v630 = vpop.permute.xlu0 %629
        %631 = vrot.lane.b32.xlu0 %v397, 127
        %v632 = vpop.permute.xlu0 %631
        %633 = vrot.lane.b32.xlu0 %v399, 127
        %v634 = vpop.permute.xlu0 %633
        %635 = vrot.lane.b32.xlu0 %v401, 127
        %v636 = vpop.permute.xlu0 %635
        %637 = vrot.lane.b32.xlu0 %v396, 127
        %v638 = vpop.permute.xlu0 %637
        %639 = vrot.lane.b32.xlu0 %v398, 127
        %v640 = vpop.permute.xlu0 %639
        %641 = vrot.lane.b32.xlu0 %v400, 127
        %v642 = vpop.permute.xlu0 %641
        %643 = vrot.lane.b32.xlu0 %v402, 127
        %v644 = vpop.permute.xlu0 %643
        %vm645 = vcmp.lt.s32.totalorder %v420, 127
        %v646 = vsel %vm645, %v630, %v638
        %v647 = vsel %vm645, %v632, %v640
        %v648 = vsel %vm645, %v634, %v642
        %v649 = vsel %vm645, %v636, %v644
        %v650 = vsel %vm645, %v638, %v630
        %v651 = vsel %vm645, %v640, %v632
        %v652 = vsel %vm645, %v642, %v634
        %v653 = vsel %vm645, %v644, %v636
        %s654 = scalar_lea.vmem [#allocation2], 320
        %v655 = vld [vmem:[%s654] sm:$0xff]
        %v656 = vld [vmem:[%s654 + $0x8] sm:$0xff]
        %v657 = vld [vmem:[%s654 + $0x10] sm:$0xff]
        %v658 = vld [vmem:[%s654 + $0x18] sm:$0xff]
        %v659 = vld [vmem:[%s654 + $0x20] sm:$0xff]
        %v660 = vld [vmem:[%s654 + $0x28] sm:$0xff]
        %v661 = vld [vmem:[%s654 + $0x30] sm:$0xff]
        %v662 = vld [vmem:[%s654 + $0x38] sm:$0xff]
        %v663 = vmul.f32 %v646, %v655
        %v664 = vmul.f32 %v650, %v656
        %v665 = vmul.f32 %v647, %v657
        %v666 = vmul.f32 %v651, %v658
        %v667 = vmul.f32 %v648, %v659
        %v668 = vmul.f32 %v652, %v660
        %v669 = vmul.f32 %v649, %v661
        %v670 = vmul.f32 %v653, %v662
        %v671 = vadd.f32 %v621, %v663
        %v672 = vadd.f32 %v622, %v664
        %v673 = vadd.f32 %v623, %v665
        %v674 = vadd.f32 %v624, %v666
        %v675 = vadd.f32 %v625, %v667
        %v676 = vadd.f32 %v626, %v668
        %v677 = vadd.f32 %v627, %v669
        %v678 = vadd.f32 %v628, %v670
        %679 = vrot.lane.b32.xlu0 %v395, 113
        %v680 = vpop.permute.xlu0 %679
        %681 = vrot.lane.b32.xlu0 %v397, 113
        %v682 = vpop.permute.xlu0 %681
        %683 = vrot.lane.b32.xlu0 %v399, 113
        %v684 = vpop.permute.xlu0 %683
        %685 = vrot.lane.b32.xlu0 %v401, 113
        %v686 = vpop.permute.xlu0 %685
        %687 = vrot.lane.b32.xlu0 %v396, 113
        %v688 = vpop.permute.xlu0 %687
        %689 = vrot.lane.b32.xlu0 %v398, 113
        %v690 = vpop.permute.xlu0 %689
        %691 = vrot.lane.b32.xlu0 %v400, 113
        %v692 = vpop.permute.xlu0 %691
        %693 = vrot.lane.b32.xlu0 %v402, 113
        %v694 = vpop.permute.xlu0 %693
        %vm695 = vcmp.lt.s32.totalorder %v420, 113
        %v696 = vsel %vm695, %v680, %v688
        %v697 = vsel %vm695, %v682, %v690
        %v698 = vsel %vm695, %v684, %v692
        %v699 = vsel %vm695, %v686, %v694
        %v700 = vsel %vm695, %v688, %v680
        %v701 = vsel %vm695, %v690, %v682
        %v702 = vsel %vm695, %v692, %v684
        %v703 = vsel %vm695, %v694, %v686
        %s704 = scalar_lea.vmem [#allocation2], 384
        %v705 = vld [vmem:[%s704] sm:$0xff]
        %v706 = vld [vmem:[%s704 + $0x8] sm:$0xff]
        %v707 = vld [vmem:[%s704 + $0x10] sm:$0xff]
        %v708 = vld [vmem:[%s704 + $0x18] sm:$0xff]
        %v709 = vld [vmem:[%s704 + $0x20] sm:$0xff]
        %v710 = vld [vmem:[%s704 + $0x28] sm:$0xff]
        %v711 = vld [vmem:[%s704 + $0x30] sm:$0xff]
        %v712 = vld [vmem:[%s704 + $0x38] sm:$0xff]
        %v713 = vmul.f32 %v696, %v705
        %v714 = vmul.f32 %v700, %v706
        %v715 = vmul.f32 %v697, %v707
        %v716 = vmul.f32 %v701, %v708
        %v717 = vmul.f32 %v698, %v709
        %v718 = vmul.f32 %v702, %v710
        %v719 = vmul.f32 %v699, %v711
        %v720 = vmul.f32 %v703, %v712
        %v721 = vadd.f32 %v671, %v713
        %v722 = vadd.f32 %v672, %v714
        %v723 = vadd.f32 %v673, %v715
        %v724 = vadd.f32 %v674, %v716
        %v725 = vadd.f32 %v675, %v717
        %v726 = vadd.f32 %v676, %v718
        %v727 = vadd.f32 %v677, %v719
        %v728 = vadd.f32 %v678, %v720
        %729 = vrot.lane.b32.xlu0 %v395, 112
        %v730 = vpop.permute.xlu0 %729
        %731 = vrot.lane.b32.xlu0 %v397, 112
        %v732 = vpop.permute.xlu0 %731
        %733 = vrot.lane.b32.xlu0 %v399, 112
        %v734 = vpop.permute.xlu0 %733
        %735 = vrot.lane.b32.xlu0 %v401, 112
        %v736 = vpop.permute.xlu0 %735
        %737 = vrot.lane.b32.xlu0 %v396, 112
        %v738 = vpop.permute.xlu0 %737
        %739 = vrot.lane.b32.xlu0 %v398, 112
        %v740 = vpop.permute.xlu0 %739
        %741 = vrot.lane.b32.xlu0 %v400, 112
        %v742 = vpop.permute.xlu0 %741
        %743 = vrot.lane.b32.xlu0 %v402, 112
        %v744 = vpop.permute.xlu0 %743
        %vm745 = vcmp.lt.s32.totalorder %v420, 112
        %v746 = vsel %vm745, %v730, %v738
        %v747 = vsel %vm745, %v732, %v740
        %v748 = vsel %vm745, %v734, %v742
        %v749 = vsel %vm745, %v736, %v744
        %v750 = vsel %vm745, %v738, %v730
        %v751 = vsel %vm745, %v740, %v732
        %v752 = vsel %vm745, %v742, %v734
        %v753 = vsel %vm745, %v744, %v736
        %s754 = scalar_lea.vmem [#allocation2], 448
        %v755 = vld [vmem:[%s754] sm:$0xff]
        %v756 = vld [vmem:[%s754 + $0x8] sm:$0xff]
        %v757 = vld [vmem:[%s754 + $0x10] sm:$0xff]
        %v758 = vld [vmem:[%s754 + $0x18] sm:$0xff]
        %v759 = vld [vmem:[%s754 + $0x20] sm:$0xff]
        %v760 = vld [vmem:[%s754 + $0x28] sm:$0xff]
        %v761 = vld [vmem:[%s754 + $0x30] sm:$0xff]
        %v762 = vld [vmem:[%s754 + $0x38] sm:$0xff]
        %v763 = vmul.f32 %v746, %v755
        %v764 = vmul.f32 %v750, %v756
        %v765 = vmul.f32 %v747, %v757
        %v766 = vmul.f32 %v751, %v758
        %v767 = vmul.f32 %v748, %v759
        %v768 = vmul.f32 %v752, %v760
        %v769 = vmul.f32 %v749, %v761
        %v770 = vmul.f32 %v753, %v762
        %v771 = vadd.f32 %v721, %v763
        %v772 = vadd.f32 %v722, %v764
        %v773 = vadd.f32 %v723, %v765
        %v774 = vadd.f32 %v724, %v766
        %v775 = vadd.f32 %v725, %v767
        %v776 = vadd.f32 %v726, %v768
        %v777 = vadd.f32 %v727, %v769
        %v778 = vadd.f32 %v728, %v770
        %779 = vrot.lane.b32.xlu0 %v395, 111
        %v780 = vpop.permute.xlu0 %779
        %781 = vrot.lane.b32.xlu0 %v397, 111
        %v782 = vpop.permute.xlu0 %781
        %783 = vrot.lane.b32.xlu0 %v399, 111
        %v784 = vpop.permute.xlu0 %783
        %785 = vrot.lane.b32.xlu0 %v401, 111
        %v786 = vpop.permute.xlu0 %785
        %787 = vrot.lane.b32.xlu0 %v396, 111
        %v788 = vpop.permute.xlu0 %787
        %789 = vrot.lane.b32.xlu0 %v398, 111
        %v790 = vpop.permute.xlu0 %789
        %791 = vrot.lane.b32.xlu0 %v400, 111
        %v792 = vpop.permute.xlu0 %791
        %793 = vrot.lane.b32.xlu0 %v402, 111
        %v794 = vpop.permute.xlu0 %793
        %vm795 = vcmp.lt.s32.totalorder %v420, 111
        %v796 = vsel %vm795, %v780, %v788
        %v797 = vsel %vm795, %v782, %v790
        %v798 = vsel %vm795, %v784, %v792
        %v799 = vsel %vm795, %v786, %v794
        %v800 = vsel %vm795, %v788, %v780
        %v801 = vsel %vm795, %v790, %v782
        %v802 = vsel %vm795, %v792, %v784
        %v803 = vsel %vm795, %v794, %v786
        %s804 = scalar_lea.vmem [#allocation2], 512
        %v805 = vld [vmem:[%s804] sm:$0xff]
        %v806 = vld [vmem:[%s804 + $0x8] sm:$0xff]
        %v807 = vld [vmem:[%s804 + $0x10] sm:$0xff]
        %v808 = vld [vmem:[%s804 + $0x18] sm:$0xff]
        %v809 = vld [vmem:[%s804 + $0x20] sm:$0xff]
        %v810 = vld [vmem:[%s804 + $0x28] sm:$0xff]
        %v811 = vld [vmem:[%s804 + $0x30] sm:$0xff]
        %v812 = vld [vmem:[%s804 + $0x38] sm:$0xff]
        %v813 = vmul.f32 %v796, %v805
        %v814 = vmul.f32 %v800, %v806
        %v815 = vmul.f32 %v797, %v807
        %v816 = vmul.f32 %v801, %v808
        %v817 = vmul.f32 %v798, %v809
        %v818 = vmul.f32 %v802, %v810
        %v819 = vmul.f32 %v799, %v811
        %v820 = vmul.f32 %v803, %v812
        %v821 = vadd.f32 %v771, %v813
        %v822 = vadd.f32 %v772, %v814
        %v823 = vadd.f32 %v773, %v815
        %v824 = vadd.f32 %v774, %v816
        %v825 = vadd.f32 %v775, %v817
        %v826 = vadd.f32 %v776, %v818
        %v827 = vadd.f32 %v777, %v819
        %v828 = vadd.f32 %v778, %v820
        %v829 = vld [vmem:[%s5] sm:$0xff]
        %v830 = vld [vmem:[%s5 + $0x8] sm:$0xff]
        %v831 = vld [vmem:[%s5 + $0x10] sm:$0xff]
        %v832 = vld [vmem:[%s5 + $0x18] sm:$0xff]
        %834 = vset.pattern.permute.xlu0 0
        %835 = vperm.xlu0 %834, %v829
        %v836 = vpop.permute.xlu0 %835
        %839 = vset.pattern.permute.xlu0 0
        %840 = vperm.xlu0 %839, %v830
        %v841 = vpop.permute.xlu0 %840
        %844 = vset.pattern.permute.xlu0 0
        %845 = vperm.xlu0 %844, %v831
        %v846 = vpop.permute.xlu0 %845
        %849 = vset.pattern.permute.xlu0 0
        %850 = vperm.xlu0 %849, %v832
        %v851 = vpop.permute.xlu0 %850
        %v853 = vadd.f32 %v821, %v836
        %v854 = vadd.f32 %v822, %v836
        %v855 = vadd.f32 %v823, %v841
        %v856 = vadd.f32 %v824, %v841
        %v857 = vadd.f32 %v825, %v846
        %v858 = vadd.f32 %v826, %v846
        %v859 = vadd.f32 %v827, %v851
        %v860 = vadd.f32 %v828, %v851
        %v861 = vmax.f32 %v853, 0.0
        %v862 = vmax.f32 %v854, 0.0
        %v863 = vmax.f32 %v855, 0.0
        %v864 = vmax.f32 %v856, 0.0
        %v865 = vmax.f32 %v857, 0.0
        %v866 = vmax.f32 %v858, 0.0
        %v867 = vmax.f32 %v859, 0.0
        %v868 = vmax.f32 %v860, 0.0
        %v869 = vld [vmem:[%s3] sm:$0xff]
        %v870 = vld [vmem:[%s6] sm:$0xff]
        %872 = vset.pattern.permute.xlu0 0
        %873 = vperm.xlu0 %872, %v870
        %v874 = vpop.permute.xlu0 %873
        %vm876 = vcmask 326656
        %v878 = vsel %vm876, %v869, 0
        %880 = vmatpush.msra.mxu0 0.0
        %881 = vmatpush.msra.mxu0 0.0
        %882 = vmatpush.msra.mxu0 0.0
        %883 = vmatpush.msra.mxu0 0.0
        %884 = vmatpush.msra.mxu0 0.0
        %885 = vmatpush.msra.mxu0 0.0
        %886 = vmatpush.msra.mxu0 0.0
        %887 = vmatpush.msra.mxu0 0.0
        %888 = vmatpush.msra.mxu0 0.0
        %889 = vmatpush.msra.mxu0 0.0
        %890 = vmatpush.msra.mxu0 0.0
        %891 = vmatpush.msra.mxu0 %v294
        %892 = vmatpush.msra.mxu0 %v867
        %893 = vmatpush.msra.mxu0 %v865
        %894 = vmatpush.msra.mxu0 %v863
        %895 = vmatpush.msra.mxu0 %v861
        %896 = vmatmul.f32.gmra.mxu0 %v878
        %v897 = vpop.f32.mrf.mxu0
        %v898 = vadd.f32 %v874, %v897
        %899 = vdwg.mxu0
        %900 = vmatpush.msra.mxu0 0.0
        %901 = vmatpush.msra.mxu0 0.0
        %902 = vmatpush.msra.mxu0 0.0
        %903 = vmatpush.msra.mxu0 0.0
        %904 = vmatpush.msra.mxu0 0.0
        %905 = vmatpush.msra.mxu0 0.0
        %906 = vmatpush.msra.mxu0 0.0
        %907 = vmatpush.msra.mxu0 0.0
        %908 = vmatpush.msra.mxu0 0.0
        %909 = vmatpush.msra.mxu0 0.0
        %910 = vmatpush.msra.mxu0 0.0
        %911 = vmatpush.msra.mxu0 %v295
        %912 = vmatpush.msra.mxu0 %v868
        %913 = vmatpush.msra.mxu0 %v866
        %914 = vmatpush.msra.mxu0 %v864
        %915 = vmatpush.msra.mxu0 %v862
        %916 = vmatmul.f32.gmra.mxu0 %v878
        %v917 = vpop.f32.mrf.mxu0
        %v918 = vadd.f32 %v874, %v917
        %919 = vdwg.mxu0
        %920 = vst [vmem:[%s288] sm:$0xff] %v898
        %921 = vst [vmem:[%s288 + $0x8] sm:$0xff] %v918
        %s922 = sand.u32 %s182, 1
        %s923 = scalar_lea.sflag [#allocation4], %s922
        %s924 = sand.u32 %s182, 1
        %s925 = smul.addr %s924, 16
        %s926 = scalar_lea.vmem [#allocation5], %s925
        // Predicated region
        $region53: #{tpu_custom_call.1} parent=47 // pred_check
          %p927 = pneg %p192
        $region54: #{tpu_custom_call.1} parent=47 // pred_check_branch
          %929 = sbr.rel (%p927) target = $region56
        $region55: #{tpu_custom_call.1} parent=47 // pred_region
          %931 = vsyncadd %s923, 0
          %s932 = smul.addr %s22, 2
          %s933 = smul.addr %s932, 8
          %s934 = scalar_lea.hbm %s7, %s933
          %s936 = sshll.u32 %s926, 4
          %s937 = int_to_ptr.vmem [resolvable:$true] %s936
          %s938 = sshll.u32 %s934, 4
          %s939 = int_to_ptr.hbm [resolvable:$true] %s938
          %941 = dma.vmem_to_hbm [thread:$0]  %s937, 256, %s939, %s923
        $region56: #{tpu_custom_call.1} parent=47 // pred_fallthru
          _
      $region48: #{tpu_custom_call.1} parent=5 // pred_fallthru
        _
      %p942 = scmp.le.s32.totalorder 2, %s17
      // Predicated region
      $region57: #{tpu_custom_call.1} parent=5 // pred_check
        %p943 = pneg %p942
      $region58: #{tpu_custom_call.1} parent=5 // pred_check_branch
        %945 = sbr.rel (%p943) target = $region60
      $region59: #{tpu_custom_call.1} parent=5 // pred_region
        %s946 = ssub.s32 %s17, 2
        // Predicated region
        $region61: #{tpu_custom_call.1} parent=59 // pred_check
          %p947 = pneg %p198
        $region62: #{tpu_custom_call.1} parent=59 // pred_check_branch
          %949 = sbr.rel (%p947) target = $region64
        $region63: #{tpu_custom_call.1} parent=59 // pred_region
          %s950 = sand.u32 %s183, 1
          %s951 = scalar_lea.sflag [#allocation4], %s950
          %s952 = sand.u32 %s183, 1
          %s953 = smul.addr %s952, 16
          %s954 = scalar_lea.vmem [#allocation5], %s953
          %956 = dma.done %s951, 256
        $region64: #{tpu_custom_call.1} parent=59 // pred_fallthru
          _
      $region60: #{tpu_custom_call.1} parent=5 // pred_fallthru
        _
    $region6: #{tpu_custom_call.1} parent=1 // loop_footer
      %s21 = sadd.s32 1, %s17
    $region7: #{tpu_custom_call.1} parent=1 // loop_footer_branch
      %16 = sbr.rel target = $region3
    $region8: #{tpu_custom_call.1} parent=1 // loop_exit
      _
    %957 = vsyncpa [#allocation3], 1
    %s958 = scalar_lea.sflag [#allocation3], 1
    %959 = vsyncpa %s958, 1
    %960 = vsyncpa [#allocation4], 1
    %s961 = scalar_lea.sflag [#allocation4], 1
    %962 = vsyncpa %s961, 1

</llo_original>
